<compile_context>
chip_gen: v5e
topology: v5e:2x2
jax: 0.10.0
libtpu: 0.0.40
codegen_flags: <defaults>
</compile_context>

<pallas_src>
import functools

import jax
import jax.numpy as jnp
from jax.experimental import pallas as pl
from jax.experimental.pallas import tpu as pltpu

_BIG = 1e30  # bias for padded points; large but finite (no inf/NaN hazards)


def _chamfer_kernel(x1_ref, x2_ref, dist1_ref, dist2_ref, *, tm, resident_x2):
    # x1_ref: (1, 8, tn)    rows: [x, y, z, |p|^2 (+pad bias), 1, 0, 0, 0]
    # x2_ref: (1, 8, m_pad) rows: [-2x, -2y, -2z, 1, |p|^2 (+pad bias), 0, 0, 0]
    #         (or (1, 8, tm) when the resident fallback is disabled)
    i = pl.program_id(1)              # N-tile index
    j = pl.program_id(2)              # M-tile index (innermost, reduction)

    lhs = x1_ref[0]                                        # (8, tn)
    off = pl.multiple_of(j * tm, tm)
    if resident_x2:
        rhs = x2_ref[0, :, pl.ds(off, tm)]                 # (8, tm) strip
    else:
        rhs = x2_ref[0]                                    # (8, tm)

    # One MXU contraction over the coordinate axis produces the complete
    # squared-distance tile (|p1|^2 + |p2|^2 - 2 p1.p2 + pad biases).
    d = jax.lax.dot_general(
        lhs, rhs, (((0,), (0,)), ((), ())),
        preferred_element_type=jnp.float32)                # (tn, tm)

    # dist1: running min over M-tiles; output block resident across j.
    @pl.when(j == 0)
    def _():
        dist1_ref[...] = jnp.full(dist1_ref.shape, _BIG, dist1_ref.dtype)

    dist1_ref[0, 0, :] = jnp.minimum(dist1_ref[0, 0, :], jnp.min(d, axis=1))

    # dist2: running min over N-tiles; the full-length row stays resident for
    # the whole batch element (its block index only depends on b).
    @pl.when((i == 0) & (j == 0))
    def _():
        dist2_ref[...] = jnp.full(dist2_ref.shape, _BIG, dist2_ref.dtype)

    cur = dist2_ref[0, 0, pl.ds(off, tm)]
    dist2_ref[0, 0, pl.ds(off, tm)] = jnp.minimum(cur, jnp.min(d, axis=0))


def _round_up(x, m):
    return ((x + m - 1) // m) * m


def _augment(xyz, pad_to, is_rhs):
    """(B, P, 3) -> (B, 8, pad_to) augmented coordinate-major operand."""
    B, P, _ = xyz.shape
    x = jnp.transpose(xyz.astype(jnp.float32), (0, 2, 1))   # (B, 3, P)
    sq = jnp.sum(x * x, axis=1)                              # (B, P)
    ones = jnp.ones((B, P), jnp.float32)
    zeros = jnp.zeros((B, P), jnp.float32)
    if is_rhs:
        rows = [-2.0 * x[:, 0], -2.0 * x[:, 1], -2.0 * x[:, 2],
                ones, sq, zeros, zeros, zeros]
        bias_row = 4
    else:
        rows = [x[:, 0], x[:, 1], x[:, 2],
                sq, ones, zeros, zeros, zeros]
        bias_row = 3
    aug = jnp.stack(rows, axis=1)                            # (B, 8, P)
    aug = jnp.pad(aug, ((0, 0), (0, 0), (0, pad_to - P)))
    # Padded points get a +BIG bias on the norm row so they never win a min.
    bias = jnp.where(jnp.arange(pad_to) < P, 0.0, _BIG).astype(jnp.float32)
    aug = aug.at[:, bias_row, :].add(bias)
    return aug


def chamfer_distance_l2(xyz1, xyz2, *, max_tn=1024, max_tm=2048,
                        vmem_limit_bytes=48 << 20):
    """Forward of ChamferDistanceL2 (ignore_zeros=False path).

    xyz1: (B, N, 3), xyz2: (B, M, 3)  ->  scalar mean(dist1) + mean(dist2)

    Note: the ||a||^2 + ||b||^2 - 2 a.b formulation can lose ~|p|^2 * 1e-7 of
    precision in f32 for clouds with large coordinate magnitudes.
    """
    B, N, _ = xyz1.shape
    _, M, _ = xyz2.shape

    # The inner cloud's full operand + running-min row are VMEM-resident per
    # batch element, so make it the smaller cloud (chamfer's scalar result is
    # symmetric under swapping the two clouds).
    if _round_up(M, 128) > _round_up(N, 128):
        xyz1, xyz2 = xyz2, xyz1
        N, M = M, N

    # Tile sizes: multiples of 128, as large as the (48 MiB) VMEM budget
    # allows; padded sizes are rounded UP to tile multiples (never collapse
    # the tile to 128 for awkward sizes -- extra padding is benign).
    tn = min(max_tn, _round_up(N, 128))
    tm = min(max_tm, _round_up(M, 128))
    n_pad = _round_up(N, tn)
    m_pad = _round_up(M, tm)
    nt, mt = n_pad // tn, m_pad // tm

    # Keep the whole inner operand resident unless it is enormous
    # (64 bytes/point double-buffered); otherwise fall back to tiled fetch.
    resident_x2 = (64 * m_pad) <= (16 << 20)

    x1 = _augment(xyz1, n_pad, is_rhs=False)    # (B, 8, n_pad)
    x2 = _augment(xyz2, m_pad, is_rhs=True)     # (B, 8, m_pad)

    if resident_x2:
        x2_spec = pl.BlockSpec((1, 8, m_pad), lambda b, i, j: (b, 0, 0))
        x2_bytes = 8 * m_pad
    else:
        x2_spec = pl.BlockSpec((1, 8, tm), lambda b, i, j: (b, 0, j))
        x2_bytes = 8 * m_pad * nt

    kernel = functools.partial(_chamfer_kernel, tm=tm, resident_x2=resident_x2)

    cost = pl.CostEstimate(
        flops=int(2 * 8 * B * n_pad * m_pad),
        transcendentals=0,
        bytes_accessed=int(4 * B * (8 * n_pad + x2_bytes + n_pad + m_pad)),
    )

    dist1, dist2 = pl.pallas_call(
        kernel,
        out_shape=(
            jax.ShapeDtypeStruct((B, 1, n_pad), jnp.float32),
            jax.ShapeDtypeStruct((B, 1, m_pad), jnp.float32),
        ),
        grid_spec=pltpu.PrefetchScalarGridSpec(
            num_scalar_prefetch=0,
            grid=(B, nt, mt),
            in_specs=[
                pl.BlockSpec((1, 8, tn), lambda b, i, j: (b, 0, i)),
                x2_spec,
            ],
            out_specs=[
                pl.BlockSpec((1, 1, tn), lambda b, i, j: (b, 0, i)),
                pl.BlockSpec((1, 1, m_pad), lambda b, i, j: (b, 0, 0)),
            ],
        ),
        compiler_params=pltpu.CompilerParams(
            # B is parallel (megacore over batch); the N/M tile axes carry the
            # running-min accumulations so they must stay "arbitrary".
            # TODO(synk): when B == 1 on v7x, split the N-tile range over a
            # leading size-2 parallel axis and min-combine two dist2 rows.
            dimension_semantics=("parallel", "arbitrary", "arbitrary"),
            vmem_limit_bytes=vmem_limit_bytes,
        ),
        cost_estimate=cost,
    )(x1, x2)

    # Drop padded points, clamp tiny negative values from the
    # ||a||^2+||b||^2-2ab cancellation, and reduce.
    d1 = jnp.maximum(dist1[:, 0, :N], 0.0)
    d2 = jnp.maximum(dist2[:, 0, :M], 0.0)
    # TODO(synk): ignore_zeros (batch_size==1 row filtering) implies a
    # data-dependent shape change and is not expressible as a static grid.
    return jnp.mean(d1) + jnp.mean(d2)


def _reference(xyz1, xyz2):
    # Pure-JAX reference for sanity check.
    d = jnp.sum(
        (xyz1[:, :, None, :] - xyz2[:, None, :, :]) ** 2, axis=-1)  # (B,N,M)
    return jnp.mean(jnp.min(d, axis=2)) + jnp.mean(jnp.min(d, axis=1))


if __name__ == "__main__":
    key = jax.random.PRNGKey(0)
    k1, k2 = jax.random.split(key)
    B, N, M = 2, 16, 24
    xyz1 = jax.random.normal(k1, (B, N, 3), dtype=jnp.float32)
    xyz2 = jax.random.normal(k2, (B, M, 3), dtype=jnp.float32)

    out = jax.block_until_ready(chamfer_distance_l2(xyz1, xyz2))
    ref = jax.block_until_ready(_reference(xyz1, xyz2))
    assert jnp.allclose(out, ref, rtol=1e-4, atol=1e-5), (out, ref)
    print("KERNEL_OK")
</pallas_src>

<mosaic_0001>
module attributes {stable_mosaic.version = 11 : i64} {
  func.func @_chamfer_kernel(%arg0: i32, %arg1: i32, %arg2: i32, %arg3: memref<1x8x128xf32, #tpu.memory_space<vmem>>, %arg4: memref<1x8x128xf32, #tpu.memory_space<vmem>>, %arg5: memref<1x1x128xf32, #tpu.memory_space<vmem>>, %arg6: memref<1x1x128xf32, #tpu.memory_space<vmem>>) attributes {dimension_semantics = [#tpu.dimension_semantics<parallel>, #tpu.dimension_semantics<arbitrary>, #tpu.dimension_semantics<arbitrary>], iteration_bounds = array<i64: 2, 1, 1>, scalar_prefetch = 0 : i64, scratch_operands = 0 : i64, tpu.core_type = #tpu.core_type<tc>, window_params = [{transform_indices = @transform_0, window_bounds = array<i64: 1, 8, 128>}, {transform_indices = @transform_1, window_bounds = array<i64: 1, 8, 128>}, {transform_indices = @transform_2, window_bounds = array<i64: 1, 1, 128>}, {transform_indices = @transform_3, window_bounds = array<i64: 1, 1, 128>}]} {
    %c0 = arith.constant 0 : index
    %c0_0 = arith.constant 0 : index
    %c0_1 = arith.constant 0 : index
    %0 = vector.load %arg3[%c0, %c0_0, %c0_1] : memref<1x8x128xf32, #tpu.memory_space<vmem>>, vector<1x8x128xf32>
    %1 = vector.shape_cast %0 : vector<1x8x128xf32> to vector<8x128xf32>
    %c128_i32 = arith.constant 128 : i32
    %2 = arith.muli %arg2, %c128_i32 : i32
    %3 = tpu.assume_multiple %2, 128 : i32
    %c0_2 = arith.constant 0 : index
    %c0_3 = arith.constant 0 : index
    %4 = arith.index_cast %3 : i32 to index
    %5 = vector.load %arg4[%c0_2, %c0_3, %4] : memref<1x8x128xf32, #tpu.memory_space<vmem>>, vector<1x8x128xf32>
    %6 = vector.shape_cast %5 : vector<1x8x128xf32> to vector<8x128xf32>
    %cst = arith.constant dense<0.000000e+00> : vector<128x128xf32>
    %7 = tpu.matmul %1, %6, %cst {dimension_numbers = #tpu.dot_dimension_numbers<[0], [0], [1], [1], [0, 1, 1, 1], [], []>} : vector<8x128xf32>, vector<8x128xf32>, vector<128x128xf32> -> vector<128x128xf32>
    %c0_i32 = arith.constant 0 : i32
    %8 = arith.cmpi eq, %arg2, %c0_i32 : i32
    %9 = arith.extui %8 : i1 to i32
    %c0_i32_4 = arith.constant 0 : i32
    %10 = arith.cmpi ne, %9, %c0_i32_4 : i32
    scf.if %10 {
      %cst_20 = arith.constant 1.000000e+30 : f32
      %32 = vector.broadcast %cst_20 : f32 to vector<1x1x128xf32>
      %c0_21 = arith.constant 0 : index
      %c0_22 = arith.constant 0 : index
      %c0_23 = arith.constant 0 : index
      %33 = vector.load %arg5[%c0_21, %c0_22, %c0_23] : memref<1x1x128xf32, #tpu.memory_space<vmem>>, vector<1x1x128xf32>
      tpu.vector_store %arg5[%c0_21, %c0_22, %c0_23], %32 {strides = array<i32>} : memref<1x1x128xf32, #tpu.memory_space<vmem>>, vector<1x1x128xf32>,
    } else {
    }
    %c0_5 = arith.constant 0 : index
    %c0_6 = arith.constant 0 : index
    %c0_7 = arith.constant 0 : index
    %11 = vector.load %arg5[%c0_5, %c0_6, %c0_7] : memref<1x1x128xf32, #tpu.memory_space<vmem>>, vector<1x1x128xf32>
    %12 = vector.shape_cast %11 : vector<1x1x128xf32> to vector<128xf32>
    %cst_8 = arith.constant dense<0x7F800000> : vector<128xf32>
    %13 = vector.multi_reduction <minimumf>, %7, %cst_8 [1] : vector<128x128xf32> to vector<128xf32>
    %14 = arith.minimumf %12, %13 : vector<128xf32>
    %c0_9 = arith.constant 0 : index
    %c0_10 = arith.constant 0 : index
    %c0_11 = arith.constant 0 : index
    %15 = vector.load %arg5[%c0_9, %c0_10, %c0_11] : memref<1x1x128xf32, #tpu.memory_space<vmem>>, vector<1x1x128xf32>
    %16 = vector.shape_cast %15 : vector<1x1x128xf32> to vector<128xf32>
    %17 = vector.shape_cast %14 : vector<128xf32> to vector<1x1x128xf32>
    tpu.vector_store %arg5[%c0_9, %c0_10, %c0_11], %17 {strides = array<i32>} : memref<1x1x128xf32, #tpu.memory_space<vmem>>, vector<1x1x128xf32>,
    %c0_i32_12 = arith.constant 0 : i32
    %18 = arith.cmpi eq, %arg1, %c0_i32_12 : i32
    %c0_i32_13 = arith.constant 0 : i32
    %19 = arith.cmpi eq, %arg2, %c0_i32_13 : i32
    %20 = arith.andi %18, %19 : i1
    %21 = arith.extui %20 : i1 to i32
    %c0_i32_14 = arith.constant 0 : i32
    %22 = arith.cmpi ne, %21, %c0_i32_14 : i32
    scf.if %22 {
      %cst_20 = arith.constant 1.000000e+30 : f32
      %32 = vector.broadcast %cst_20 : f32 to vector<1x1x128xf32>
      %c0_21 = arith.constant 0 : index
      %c0_22 = arith.constant 0 : index
      %c0_23 = arith.constant 0 : index
      %33 = vector.load %arg6[%c0_21, %c0_22, %c0_23] : memref<1x1x128xf32, #tpu.memory_space<vmem>>, vector<1x1x128xf32>
      tpu.vector_store %arg6[%c0_21, %c0_22, %c0_23], %32 {strides = array<i32>} : memref<1x1x128xf32, #tpu.memory_space<vmem>>, vector<1x1x128xf32>,
    } else {
    }
    %c0_15 = arith.constant 0 : index
    %c0_16 = arith.constant 0 : index
    %23 = arith.index_cast %3 : i32 to index
    %24 = vector.load %arg6[%c0_15, %c0_16, %23] : memref<1x1x128xf32, #tpu.memory_space<vmem>>, vector<1x1x128xf32>
    %25 = vector.shape_cast %24 : vector<1x1x128xf32> to vector<128xf32>
    %cst_17 = arith.constant dense<0x7F800000> : vector<128xf32>
    %26 = vector.multi_reduction <minimumf>, %7, %cst_17 [0] : vector<128x128xf32> to vector<128xf32>
    %27 = arith.minimumf %25, %26 : vector<128xf32>
    %c0_18 = arith.constant 0 : index
    %c0_19 = arith.constant 0 : index
    %28 = arith.index_cast %3 : i32 to index
    %29 = vector.load %arg6[%c0_18, %c0_19, %28] : memref<1x1x128xf32, #tpu.memory_space<vmem>>, vector<1x1x128xf32>
    %30 = vector.shape_cast %29 : vector<1x1x128xf32> to vector<128xf32>
    %31 = vector.shape_cast %27 : vector<128xf32> to vector<1x1x128xf32>
    tpu.vector_store %arg6[%c0_18, %c0_19, %28], %31 {strides = array<i32>} : memref<1x1x128xf32, #tpu.memory_space<vmem>>, vector<1x1x128xf32>,
    return
  }
  func.func @transform_0(%arg0: i32, %arg1: i32, %arg2: i32) -> (i32, i32, i32) {
    %c0_i32 = arith.constant 0 : i32
    %c0_i32_0 = arith.constant 0 : i32
    return %arg0, %c0_i32, %arg1 : i32, i32, i32
  }
  func.func @transform_1(%arg0: i32, %arg1: i32, %arg2: i32) -> (i32, i32, i32) {
    %c0_i32 = arith.constant 0 : i32
    %c0_i32_0 = arith.constant 0 : i32
    %c0_i32_1 = arith.constant 0 : i32
    return %arg0, %c0_i32, %c0_i32_0 : i32, i32, i32
  }
  func.func @transform_2(%arg0: i32, %arg1: i32, %arg2: i32) -> (i32, i32, i32) {
    %c0_i32 = arith.constant 0 : i32
    %c0_i32_0 = arith.constant 0 : i32
    return %arg0, %c0_i32, %arg1 : i32, i32, i32
  }
  func.func @transform_3(%arg0: i32, %arg1: i32, %arg2: i32) -> (i32, i32, i32) {
    %c0_i32 = arith.constant 0 : i32
    %c0_i32_0 = arith.constant 0 : i32
    %c0_i32_1 = arith.constant 0 : i32
    return %arg0, %c0_i32, %c0_i32_0 : i32, i32, i32
  }
}

</mosaic_0001>

<llo_original>
// kernel: tpu_custom_call.1
$region0: #{tpu_custom_call.1}
  #allocation0 [shape = 'u32[]', space=smem, size = 0x4, offset = 0x4, fixed_abs, tag = 'smem constant byte address 0x4 - core index']
  #allocation1 [shape = 'u32[72,128]{1,0:T(1,128)}', space=vmem, size = 0x9000, scoped, tag = 'internal scratch']
  %s0 = inlined_call_operand.hbm [shape: f32[2,8,128], index: 0, kind: input, shape index: {}]
  %s1 = inlined_call_operand.hbm [shape: f32[2,8,128], index: 1, kind: input, shape index: {}]
  %s2 = inlined_call_operand.hbm [shape: f32[2,1,128], index: 2, kind: output, shape index: {0}]
  %s3 = inlined_call_operand.hbm [shape: f32[2,1,128], index: 3, kind: output, shape index: {1}]
  %4 = xla_tuple %s2, %s3
  %s5 = sld [smem:[#allocation0]]
  $region65: #{tpu_custom_call.1} parent=0
    _
  %s7 = ssub.s32 1, %s5
  %s8 = scalar_select 0, %s7, %s5
  $region1: #{tpu_custom_call.1} parent=0
    #allocation2 [shape = 'u8[8192]{0}', space=vmem, size = 0x2000, scoped, tag = 'input window, operand 0']
    #allocation3 [shape = 's32[2]{0}', space=sflag, size = 0x8, scoped, tag = 'scoped memory for tpu_custom_call.1']
    #allocation4 [shape = 's32[2]{0}', space=sflag, size = 0x8, scoped, tag = 'scoped memory for tpu_custom_call.1']
    #allocation5 [shape = 'u8[8192]{0}', space=vmem, size = 0x2000, scoped, tag = 'input window, operand 1']
    #allocation6 [shape = 's32[2]{0}', space=sflag, size = 0x8, scoped, tag = 'scoped memory for tpu_custom_call.1']
    #allocation7 [shape = 'u8[1024]{0}', space=vmem, size = 0x400, scoped, tag = 'output window, operand 0']
    #allocation8 [shape = 'u8[1024]{0}', space=vmem, size = 0x400, scoped, tag = 'output window, operand 1']
    #allocation9 [shape = 's32[2]{0}', space=sflag, size = 0x8, scoped, tag = 'scoped memory for tpu_custom_call.1']
    %9 = vsyncpa [#allocation3], 0
    %s10 = scalar_lea.sflag [#allocation3], 1
    %11 = vsyncpa %s10, 0
    %12 = vsyncpa [#allocation6], 0
    %s13 = scalar_lea.sflag [#allocation6], 1
    %14 = vsyncpa %s13, 0
    %15 = vsyncpa [#allocation4], 0
    %s16 = scalar_lea.sflag [#allocation4], 1
    %17 = vsyncpa %s16, 0
    %18 = vsyncpa [#allocation9], 0
    %s19 = scalar_lea.sflag [#allocation9], 1
    %20 = vsyncpa %s19, 0
    loop: start=0, step=1, limit=4
    $region2: #{tpu_custom_call.1} parent=1 // loop_pre_header
      _
    $region3: #{tpu_custom_call.1} parent=1 // loop_header
      %s22 = sphi 0, %s26
      %p23 = scmp.ge.s32.totalorder %s22, 4
      %s29 = sphi 0, %s48
      %s30 = sphi 0, %s44
      %s31 = sphi 0, %s40
      %s32 = sphi 0, %s29
      %s33 = sphi 0, %s30
      %s34 = sphi 0, %s31
      %s35 = sphi 0, %s32
      %s36 = sphi 0, %s33
      %s37 = sphi 0, %s34
      %s53 = sphi 0, %s55
      %s56 = sphi 0, %s53
      %s57 = sphi 0, %s56
      %s73 = sphi 0, %s57
      %s79 = sphi 0, %s81
      %s82 = sphi 0, %s79
      %s83 = sphi 0, %s82
      %s99 = sphi 0, %s83
      %s107 = sphi 0, %s109
      %s110 = sphi 0, %s107
      %s111 = sphi 0, %s110
      %s127 = sphi 0, %s111
      %s133 = sphi 0, %s135
      %s136 = sphi 0, %s133
      %s137 = sphi 0, %s136
      %s153 = sphi 0, %s137
    $region4: #{tpu_custom_call.1} parent=1 // loop_header_branch
      %25 = sbr.rel (%p23) target = $region8
    $region5: #{tpu_custom_call.1} parent=1 // loop_body
      %s27 = ssub.s32 %s22, 1
      %s28 = ssub.s32 %s22, 2
      %s38 = sadd.s32 1, %s31
      %p39 = scmp.ge.s32.totalorder %s38, 1
      %s40 = scalar_select %p39, 0, %s38
      %s41 = sadd.s32 1, %s30
      %s42 = scalar_select %p39, %s41, %s30
      %p43 = scmp.ge.s32.totalorder %s42, 1
      %s44 = scalar_select %p43, 0, %s42
      %s45 = sadd.s32 1, %s29
      %s46 = scalar_select %p43, %s45, %s29
      %p47 = scmp.ge.s32.totalorder %s46, 2
      %s48 = scalar_select %p47, 0, %s46
      %s49 = ssub.s32 %s29, %s48
      %s50 = ssub.s32 %s30, %s44
      %s51 = sor.u32 %s49, %s50
      %p52 = scmp.eq.s32.totalorder %s51, 0
      %s54 = sadd.s32 %s53, 1
      %s55 = scalar_select %p52, %s53, %s54
      %p58 = pneg %p52
      %p59 = scmp.eq.s32.totalorder %s22, 1
      %p60 = por %p58, %p59
      %p61 = scmp.ne.s32.totalorder %s53, %s56
      %p62 = scmp.eq.s32.totalorder %s22, 0
      %p63 = por %p61, %p62
      %p64 = scmp.ne.s32.totalorder %s53, %s56
      %p65 = scmp.eq.s32.totalorder %s27, 1
      %p66 = por %p64, %p65
      %p67 = scmp.ne.s32.totalorder %s56, %s57
      %p68 = scmp.eq.s32.totalorder %s27, 0
      %p69 = por %p67, %p68
      %p70 = scmp.ne.s32.totalorder %s56, %s57
      %p71 = scmp.eq.s32.totalorder %s28, 1
      %p72 = por %p70, %p71
      %p74 = scmp.ne.s32.totalorder %s57, %s73
      %p75 = scmp.eq.s32.totalorder %s28, 0
      %p76 = por %p74, %p75
      %s77 = ssub.s32 %s29, %s48
      %p78 = scmp.eq.s32.totalorder %s77, 0
      %s80 = sadd.s32 %s79, 1
      %s81 = scalar_select %p78, %s79, %s80
      %p84 = pneg %p78
      %p85 = scmp.eq.s32.totalorder %s22, 1
      %p86 = por %p84, %p85
      %p87 = scmp.ne.s32.totalorder %s79, %s82
      %p88 = scmp.eq.s32.totalorder %s22, 0
      %p89 = por %p87, %p88
      %p90 = scmp.ne.s32.totalorder %s79, %s82
      %p91 = scmp.eq.s32.totalorder %s27, 1
      %p92 = por %p90, %p91
      %p93 = scmp.ne.s32.totalorder %s82, %s83
      %p94 = scmp.eq.s32.totalorder %s27, 0
      %p95 = por %p93, %p94
      %p96 = scmp.ne.s32.totalorder %s82, %s83
      %p97 = scmp.eq.s32.totalorder %s28, 1
      %p98 = por %p96, %p97
      %p100 = scmp.ne.s32.totalorder %s83, %s99
      %p101 = scmp.eq.s32.totalorder %s28, 0
      %p102 = por %p100, %p101
      %s103 = ssub.s32 %s29, %s48
      %s104 = ssub.s32 %s30, %s44
      %s105 = sor.u32 %s103, %s104
      %p106 = scmp.eq.s32.totalorder %s105, 0
      %s108 = sadd.s32 %s107, 1
      %s109 = scalar_select %p106, %s107, %s108
      %p112 = pneg %p106
      %p113 = scmp.eq.s32.totalorder %s22, 1
      %p114 = por %p112, %p113
      %p115 = scmp.ne.s32.totalorder %s107, %s110
      %p116 = scmp.eq.s32.totalorder %s22, 0
      %p117 = por %p115, %p116
      %p118 = scmp.ne.s32.totalorder %s107, %s110
      %p119 = scmp.eq.s32.totalorder %s27, 1
      %p120 = por %p118, %p119
      %p121 = scmp.ne.s32.totalorder %s110, %s111
      %p122 = scmp.eq.s32.totalorder %s27, 0
      %p123 = por %p121, %p122
      %p124 = scmp.ne.s32.totalorder %s110, %s111
      %p125 = scmp.eq.s32.totalorder %s28, 1
      %p126 = por %p124, %p125
      %p128 = scmp.ne.s32.totalorder %s111, %s127
      %p129 = scmp.eq.s32.totalorder %s28, 0
      %p130 = por %p128, %p129
      %s131 = ssub.s32 %s29, %s48
      %p132 = scmp.eq.s32.totalorder %s131, 0
      %s134 = sadd.s32 %s133, 1
      %s135 = scalar_select %p132, %s133, %s134
      %p138 = pneg %p132
      %p139 = scmp.eq.s32.totalorder %s22, 1
      %p140 = por %p138, %p139
      %p141 = scmp.ne.s32.totalorder %s133, %s136
      %p142 = scmp.eq.s32.totalorder %s22, 0
      %p143 = por %p141, %p142
      %p144 = scmp.ne.s32.totalorder %s133, %s136
      %p145 = scmp.eq.s32.totalorder %s27, 1
      %p146 = por %p144, %p145
      %p147 = scmp.ne.s32.totalorder %s136, %s137
      %p148 = scmp.eq.s32.totalorder %s27, 0
      %p149 = por %p147, %p148
      %p150 = scmp.ne.s32.totalorder %s136, %s137
      %p151 = scmp.eq.s32.totalorder %s28, 1
      %p152 = por %p150, %p151
      %p154 = scmp.ne.s32.totalorder %s137, %s153
      %p155 = scmp.eq.s32.totalorder %s28, 0
      %p156 = por %p154, %p155
      %p157 = scmp.le.s32.totalorder 1, %s22
      %p158 = scmp.lt.s32.totalorder %s22, 3
      %p159 = pnand %p157, %p158
      %p160 = pneg %p159
      // Predicated region
      $region9: #{tpu_custom_call.1} parent=5 // pred_check
        _
      $region10: #{tpu_custom_call.1} parent=5 // pred_check_branch
        %162 = sbr.rel (%p159) target = $region12
      $region11: #{tpu_custom_call.1} parent=5 // pred_region
        %s163 = ssub.s32 %s22, 1
      $region12: #{tpu_custom_call.1} parent=5 // pred_fallthru
        _
      %p164 = scmp.lt.s32.totalorder %s22, 2
      // Predicated region
      $region13: #{tpu_custom_call.1} parent=5 // pred_check
        %p165 = pneg %p164
      $region14: #{tpu_custom_call.1} parent=5 // pred_check_branch
        %167 = sbr.rel (%p165) target = $region16
      $region15: #{tpu_custom_call.1} parent=5 // pred_region
        // Predicated region
        $region17: #{tpu_custom_call.1} parent=15 // pred_check
          %p168 = pneg %p63
        $region18: #{tpu_custom_call.1} parent=15 // pred_check_branch
          %170 = sbr.rel (%p168) target = $region20
        $region19: #{tpu_custom_call.1} parent=15 // pred_region
          %s171 = sand.u32 %s53, 1
          %s172 = scalar_lea.sflag [#allocation3], %s171
          %s173 = sand.u32 %s53, 1
          %s174 = smul.addr %s173, 8
          %s175 = scalar_lea.vmem [#allocation2], %s174
          %177 = vsyncadd %s172, 0
          %s178 = sadd.s32 %s30, %s29
          %s179 = smul.addr %s178, 8
          %s180 = scalar_lea.hbm %s0, %s179
          %s182 = sshll.u32 %s180, 4
          %s183 = int_to_ptr.hbm [resolvable:$true] %s182
          %s184 = sshll.u32 %s175, 4
          %s185 = int_to_ptr.vmem [resolvable:$true] %s184
          %187 = dma.hbm_to_vmem [thread:$0]  %s183, 128, %s185, %s172
        $region20: #{tpu_custom_call.1} parent=15 // pred_fallthru
          _
        // Predicated region
        $region21: #{tpu_custom_call.1} parent=15 // pred_check
          %p188 = pneg %p89
        $region22: #{tpu_custom_call.1} parent=15 // pred_check_branch
          %190 = sbr.rel (%p188) target = $region24
        $region23: #{tpu_custom_call.1} parent=15 // pred_region
          %s191 = sand.u32 %s79, 1
          %s192 = scalar_lea.sflag [#allocation6], %s191
          %s193 = sand.u32 %s79, 1
          %s194 = smul.addr %s193, 8
          %s195 = scalar_lea.vmem [#allocation5], %s194
          %197 = vsyncadd %s192, 0
          %s198 = smul.addr %s29, 8
          %s199 = scalar_lea.hbm %s1, %s198
          %s201 = sshll.u32 %s199, 4
          %s202 = int_to_ptr.hbm [resolvable:$true] %s201
          %s203 = sshll.u32 %s195, 4
          %s204 = int_to_ptr.vmem [resolvable:$true] %s203
          %206 = dma.hbm_to_vmem [thread:$0]  %s202, 128, %s204, %s192
        $region24: #{tpu_custom_call.1} parent=15 // pred_fallthru
          _
      $region16: #{tpu_custom_call.1} parent=5 // pred_fallthru
        _
      %p207 = scmp.le.s32.totalorder 1, %s22
      %p208 = scmp.lt.s32.totalorder %s22, 3
      %p209 = pnand %p207, %p208
      %p210 = pneg %p209
      // Predicated region
      $region25: #{tpu_custom_call.1} parent=5 // pred_check
        _
      $region26: #{tpu_custom_call.1} parent=5 // pred_check_branch
        %212 = sbr.rel (%p209) target = $region28
      $region27: #{tpu_custom_call.1} parent=5 // pred_region
        %s213 = ssub.s32 %s22, 1
        %s214 = sand.u32 %s56, 1
        %s215 = scalar_lea.sflag [#allocation3], %s214
        %s216 = sand.u32 %s56, 1
        %s217 = smul.addr %s216, 8
        %s218 = scalar_lea.vmem [#allocation2], %s217
        // Predicated region
        $region29: #{tpu_custom_call.1} parent=27 // pred_check
          %p219 = pneg %p69
        $region30: #{tpu_custom_call.1} parent=27 // pred_check_branch
          %221 = sbr.rel (%p219) target = $region32
        $region31: #{tpu_custom_call.1} parent=27 // pred_region
          %223 = dma.done %s215, 128
        $region32: #{tpu_custom_call.1} parent=27 // pred_fallthru
          _
        %s224 = sand.u32 %s82, 1
        %s225 = scalar_lea.sflag [#allocation6], %s224
        %s226 = sand.u32 %s82, 1
        %s227 = smul.addr %s226, 8
        %s228 = scalar_lea.vmem [#allocation5], %s227
        // Predicated region
        $region33: #{tpu_custom_call.1} parent=27 // pred_check
          %p229 = pneg %p95
        $region34: #{tpu_custom_call.1} parent=27 // pred_check_branch
          %231 = sbr.rel (%p229) target = $region36
        $region35: #{tpu_custom_call.1} parent=27 // pred_region
          %233 = dma.done %s225, 128
        $region36: #{tpu_custom_call.1} parent=27 // pred_fallthru
          _
        %s234 = sand.u32 %s56, 1
        %s235 = scalar_lea.sflag [#allocation3], %s234
        %s236 = sand.u32 %s56, 1
        %s237 = smul.addr %s236, 8
        %s238 = scalar_lea.vmem [#allocation2], %s237
        %p239 = pneg %p69
        %p240 = pneg %p66
        %s241 = sand.u32 %s82, 1
        %s242 = scalar_lea.sflag [#allocation6], %s241
        %s243 = sand.u32 %s82, 1
        %s244 = smul.addr %s243, 8
        %s245 = scalar_lea.vmem [#allocation5], %s244
        %p246 = pneg %p95
        %p247 = pneg %p92
        %p248 = pneg %p123
        %p249 = pneg %p120
        %s250 = sand.u32 %s110, 1
        %s251 = scalar_lea.sflag [#allocation4], %s250
        %s252 = sand.u32 %s110, 1
        %s253 = scalar_lea.vmem [#allocation7], %s252
        %p254 = pneg %p149
        %p255 = pneg %p146
        %s256 = sand.u32 %s136, 1
        %s257 = scalar_lea.sflag [#allocation9], %s256
        %s258 = sand.u32 %s136, 1
        %s259 = scalar_lea.vmem [#allocation8], %s258
        %v260 = vld [vmem:[%s218] sm:$0xff]
        %s261 = smul.u32 %s34, 128
        %s262 = sshra.s32 %s261, 7
        %s263 = sand.u32 %s261, 127
        %s264 = scalar_lea.vmem %s228, %s262 [#allocation5]
        %v265 = vld [vmem:[%s264] sm:$0xff]
        %266 = vxpose.xlu0.b32.start [1/16] %v260, 128
        %267 = vxpose.xlu0.b32.cont [2/16] 0.0, 128
        %268 = vxpose.xlu0.b32.cont [3/16] 0.0, 128
        %269 = vxpose.xlu0.b32.cont [4/16] 0.0, 128
        %270 = vxpose.xlu0.b32.cont [5/16] 0.0, 128
        %271 = vxpose.xlu0.b32.cont [6/16] 0.0, 128
        %272 = vxpose.xlu0.b32.cont [7/16] 0.0, 128
        %273 = vxpose.xlu0.b32.cont [8/16] 0.0, 128
        %274 = vxpose.xlu0.b32.cont [9/16] 0.0, 128
        %275 = vxpose.xlu0.b32.cont [10/16] 0.0, 128
        %276 = vxpose.xlu0.b32.cont [11/16] 0.0, 128
        %277 = vxpose.xlu0.b32.cont [12/16] 0.0, 128
        %278 = vxpose.xlu0.b32.cont [13/16] 0.0, 128
        %279 = vxpose.xlu0.b32.cont [14/16] 0.0, 128
        %280 = vxpose.xlu0.b32.cont [15/16] 0.0, 128
        %281 = vxpose.xlu0.b32.end [16/16] 0.0, 128
        %v282 = vpop.trf.xlu0
        %v283 = vpop.trf.xlu0
        %v284 = vpop.trf.xlu0
        %v285 = vpop.trf.xlu0
        %v286 = vpop.trf.xlu0
        %v287 = vpop.trf.xlu0
        %v288 = vpop.trf.xlu0
        %v289 = vpop.trf.xlu0
        %v290 = vpop.trf.xlu0
        %v291 = vpop.trf.xlu0
        %v292 = vpop.trf.xlu0
        %v293 = vpop.trf.xlu0
        %v294 = vpop.trf.xlu0
        %v295 = vpop.trf.xlu0
        %v296 = vpop.trf.xlu0
        %v297 = vpop.trf.xlu0
        %vm298 = vcmask 64512
        %v300 = vsel %vm298, %v282, 0
        %v303 = vsel %vm298, %v283, 0
        %v306 = vsel %vm298, %v284, 0
        %v309 = vsel %vm298, %v285, 0
        %v312 = vsel %vm298, %v286, 0
        %v315 = vsel %vm298, %v287, 0
        %v318 = vsel %vm298, %v288, 0
        %v321 = vsel %vm298, %v289, 0
        %v324 = vsel %vm298, %v290, 0
        %v327 = vsel %vm298, %v291, 0
        %v330 = vsel %vm298, %v292, 0
        %v333 = vsel %vm298, %v293, 0
        %v336 = vsel %vm298, %v294, 0
        %v339 = vsel %vm298, %v295, 0
        %v342 = vsel %vm298, %v296, 0
        %v345 = vsel %vm298, %v297, 0
        %347 = vmatpush.msra.mxu0 0.0
        %348 = vmatpush.msra.mxu0 0.0
        %349 = vmatpush.msra.mxu0 0.0
        %350 = vmatpush.msra.mxu0 0.0
        %351 = vmatpush.msra.mxu0 0.0
        %352 = vmatpush.msra.mxu0 0.0
        %353 = vmatpush.msra.mxu0 0.0
        %354 = vmatpush.msra.mxu0 0.0
        %355 = vmatpush.msra.mxu0 0.0
        %356 = vmatpush.msra.mxu0 0.0
        %357 = vmatpush.msra.mxu0 0.0
        %358 = vmatpush.msra.mxu0 0.0
        %359 = vmatpush.msra.mxu0 0.0
        %360 = vmatpush.msra.mxu0 0.0
        %361 = vmatpush.msra.mxu0 0.0
        %362 = vmatpush.msra.mxu0 %v265
        %363 = vmatmul.f32.gmra.mxu0 %v300
        %v364 = vpop.f32.mrf.mxu0
        %v365 = vadd.f32 0.0, %v364
        %366 = vmatmul.f32.gmra.mxu0 %v303
        %v367 = vpop.f32.mrf.mxu0
        %v368 = vadd.f32 0.0, %v367
        %369 = vmatmul.f32.gmra.mxu0 %v306
        %v370 = vpop.f32.mrf.mxu0
        %v371 = vadd.f32 0.0, %v370
        %372 = vmatmul.f32.gmra.mxu0 %v309
        %v373 = vpop.f32.mrf.mxu0
        %v374 = vadd.f32 0.0, %v373
        %375 = vmatmul.f32.gmra.mxu0 %v312
        %v376 = vpop.f32.mrf.mxu0
        %v377 = vadd.f32 0.0, %v376
        %378 = vmatmul.f32.gmra.mxu0 %v315
        %v379 = vpop.f32.mrf.mxu0
        %v380 = vadd.f32 0.0, %v379
        %381 = vmatmul.f32.gmra.mxu0 %v318
        %v382 = vpop.f32.mrf.mxu0
        %v383 = vadd.f32 0.0, %v382
        %384 = vmatmul.f32.gmra.mxu0 %v321
        %v385 = vpop.f32.mrf.mxu0
        %v386 = vadd.f32 0.0, %v385
        %387 = vmatmul.f32.gmra.mxu0 %v324
        %v388 = vpop.f32.mrf.mxu0
        %v389 = vadd.f32 0.0, %v388
        %390 = vmatmul.f32.gmra.mxu0 %v327
        %v391 = vpop.f32.mrf.mxu0
        %v392 = vadd.f32 0.0, %v391
        %393 = vmatmul.f32.gmra.mxu0 %v330
        %v394 = vpop.f32.mrf.mxu0
        %v395 = vadd.f32 0.0, %v394
        %396 = vmatmul.f32.gmra.mxu0 %v333
        %v397 = vpop.f32.mrf.mxu0
        %v398 = vadd.f32 0.0, %v397
        %399 = vmatmul.f32.gmra.mxu0 %v336
        %v400 = vpop.f32.mrf.mxu0
        %v401 = vadd.f32 0.0, %v400
        %402 = vmatmul.f32.gmra.mxu0 %v339
        %v403 = vpop.f32.mrf.mxu0
        %v404 = vadd.f32 0.0, %v403
        %405 = vmatmul.f32.gmra.mxu0 %v342
        %v406 = vpop.f32.mrf.mxu0
        %v407 = vadd.f32 0.0, %v406
        %408 = vmatmul.f32.gmra.mxu0 %v345
        %v409 = vpop.f32.mrf.mxu0
        %v410 = vadd.f32 0.0, %v409
        %411 = vdwg.mxu0
        %p412 = scmp.eq.s32.totalorder %s34, 0
        // Predicated region
        $region37: #{tpu_custom_call.1} parent=27 // pred_check
          %p413 = pneg %p412
        $region38: #{tpu_custom_call.1} parent=27 // pred_check_branch
          %415 = sbr.rel (%p413) target = $region40
        $region39: #{tpu_custom_call.1} parent=27 // pred_region
          %416 = vst [vmem:[%s253] sm:$0x1] 1e+30
        $region40: #{tpu_custom_call.1} parent=27 // pred_fallthru
          _
        %v417 = vld [vmem:[%s253] sm:$0x1]
        %418 = vmin.xlane.f32.xlu0 %v365
        %v419 = vpop.xlane.xlu0 %418
        %420 = vmin.xlane.f32.xlu0 %v368
        %v421 = vpop.xlane.xlu0 %420
        %422 = vmin.xlane.f32.xlu0 %v371
        %v423 = vpop.xlane.xlu0 %422
        %424 = vmin.xlane.f32.xlu0 %v374
        %v425 = vpop.xlane.xlu0 %424
        %426 = vmin.xlane.f32.xlu0 %v377
        %v427 = vpop.xlane.xlu0 %426
        %428 = vmin.xlane.f32.xlu0 %v380
        %v429 = vpop.xlane.xlu0 %428
        %430 = vmin.xlane.f32.xlu0 %v383
        %v431 = vpop.xlane.xlu0 %430
        %432 = vmin.xlane.f32.xlu0 %v386
        %v433 = vpop.xlane.xlu0 %432
        %434 = vmin.xlane.f32.xlu0 %v389
        %v435 = vpop.xlane.xlu0 %434
        %436 = vmin.xlane.f32.xlu0 %v392
        %v437 = vpop.xlane.xlu0 %436
        %438 = vmin.xlane.f32.xlu0 %v395
        %v439 = vpop.xlane.xlu0 %438
        %440 = vmin.xlane.f32.xlu0 %v398
        %v441 = vpop.xlane.xlu0 %440
        %442 = vmin.xlane.f32.xlu0 %v401
        %v443 = vpop.xlane.xlu0 %442
        %444 = vmin.xlane.f32.xlu0 %v404
        %v445 = vpop.xlane.xlu0 %444
        %446 = vmin.xlane.f32.xlu0 %v407
        %v447 = vpop.xlane.xlu0 %446
        %448 = vmin.xlane.f32.xlu0 %v410
        %v449 = vpop.xlane.xlu0 %448
        %v466 = vperm.slane %v419, 0
        %v467 = vperm.slane %v419, 1
        %v468 = vperm.slane %v419, 2
        %v469 = vperm.slane %v419, 3
        %v470 = vperm.slane %v419, 4
        %v471 = vperm.slane %v419, 5
        %v472 = vperm.slane %v419, 6
        %v473 = vperm.slane %v419, 7
        %v474 = vperm.slane %v421, 0
        %v475 = vperm.slane %v421, 1
        %v476 = vperm.slane %v421, 2
        %v477 = vperm.slane %v421, 3
        %v478 = vperm.slane %v421, 4
        %v479 = vperm.slane %v421, 5
        %v480 = vperm.slane %v421, 6
        %v481 = vperm.slane %v421, 7
        %v482 = vperm.slane %v423, 0
        %v483 = vperm.slane %v423, 1
        %v484 = vperm.slane %v423, 2
        %v485 = vperm.slane %v423, 3
        %v486 = vperm.slane %v423, 4
        %v487 = vperm.slane %v423, 5
        %v488 = vperm.slane %v423, 6
        %v489 = vperm.slane %v423, 7
        %v490 = vperm.slane %v425, 0
        %v491 = vperm.slane %v425, 1
        %v492 = vperm.slane %v425, 2
        %v493 = vperm.slane %v425, 3
        %v494 = vperm.slane %v425, 4
        %v495 = vperm.slane %v425, 5
        %v496 = vperm.slane %v425, 6
        %v497 = vperm.slane %v425, 7
        %v498 = vperm.slane %v427, 0
        %v499 = vperm.slane %v427, 1
        %v500 = vperm.slane %v427, 2
        %v501 = vperm.slane %v427, 3
        %v502 = vperm.slane %v427, 4
        %v503 = vperm.slane %v427, 5
        %v504 = vperm.slane %v427, 6
        %v505 = vperm.slane %v427, 7
        %v506 = vperm.slane %v429, 0
        %v507 = vperm.slane %v429, 1
        %v508 = vperm.slane %v429, 2
        %v509 = vperm.slane %v429, 3
        %v510 = vperm.slane %v429, 4
        %v511 = vperm.slane %v429, 5
        %v512 = vperm.slane %v429, 6
        %v513 = vperm.slane %v429, 7
        %v514 = vperm.slane %v431, 0
        %v515 = vperm.slane %v431, 1
        %v516 = vperm.slane %v431, 2
        %v517 = vperm.slane %v431, 3
        %v518 = vperm.slane %v431, 4
        %v519 = vperm.slane %v431, 5
        %v520 = vperm.slane %v431, 6
        %v521 = vperm.slane %v431, 7
        %v522 = vperm.slane %v433, 0
        %v523 = vperm.slane %v433, 1
        %v524 = vperm.slane %v433, 2
        %v525 = vperm.slane %v433, 3
        %v526 = vperm.slane %v433, 4
        %v527 = vperm.slane %v433, 5
        %v528 = vperm.slane %v433, 6
        %v529 = vperm.slane %v433, 7
        %v530 = vperm.slane %v435, 0
        %v531 = vperm.slane %v435, 1
        %v532 = vperm.slane %v435, 2
        %v533 = vperm.slane %v435, 3
        %v534 = vperm.slane %v435, 4
        %v535 = vperm.slane %v435, 5
        %v536 = vperm.slane %v435, 6
        %v537 = vperm.slane %v435, 7
        %v538 = vperm.slane %v437, 0
        %v539 = vperm.slane %v437, 1
        %v540 = vperm.slane %v437, 2
        %v541 = vperm.slane %v437, 3
        %v542 = vperm.slane %v437, 4
        %v543 = vperm.slane %v437, 5
        %v544 = vperm.slane %v437, 6
        %v545 = vperm.slane %v437, 7
        %v546 = vperm.slane %v439, 0
        %v547 = vperm.slane %v439, 1
        %v548 = vperm.slane %v439, 2
        %v549 = vperm.slane %v439, 3
        %v550 = vperm.slane %v439, 4
        %v551 = vperm.slane %v439, 5
        %v552 = vperm.slane %v439, 6
        %v553 = vperm.slane %v439, 7
        %v554 = vperm.slane %v441, 0
        %v555 = vperm.slane %v441, 1
        %v556 = vperm.slane %v441, 2
        %v557 = vperm.slane %v441, 3
        %v558 = vperm.slane %v441, 4
        %v559 = vperm.slane %v441, 5
        %v560 = vperm.slane %v441, 6
        %v561 = vperm.slane %v441, 7
        %v562 = vperm.slane %v443, 0
        %v563 = vperm.slane %v443, 1
        %v564 = vperm.slane %v443, 2
        %v565 = vperm.slane %v443, 3
        %v566 = vperm.slane %v443, 4
        %v567 = vperm.slane %v443, 5
        %v568 = vperm.slane %v443, 6
        %v569 = vperm.slane %v443, 7
        %v570 = vperm.slane %v445, 0
        %v571 = vperm.slane %v445, 1
        %v572 = vperm.slane %v445, 2
        %v573 = vperm.slane %v445, 3
        %v574 = vperm.slane %v445, 4
        %v575 = vperm.slane %v445, 5
        %v576 = vperm.slane %v445, 6
        %v577 = vperm.slane %v445, 7
        %v578 = vperm.slane %v447, 0
        %v579 = vperm.slane %v447, 1
        %v580 = vperm.slane %v447, 2
        %v581 = vperm.slane %v447, 3
        %v582 = vperm.slane %v447, 4
        %v583 = vperm.slane %v447, 5
        %v584 = vperm.slane %v447, 6
        %v585 = vperm.slane %v447, 7
        %v586 = vperm.slane %v449, 0
        %v587 = vperm.slane %v449, 1
        %v588 = vperm.slane %v449, 2
        %v589 = vperm.slane %v449, 3
        %v590 = vperm.slane %v449, 4
        %v591 = vperm.slane %v449, 5
        %v592 = vperm.slane %v449, 6
        %v593 = vperm.slane %v449, 7
        %594 = vst [vmem:[#allocation1] ss:$9 sm:$0xff] %v466
        %s595 = scalar_lea.vmem [#allocation1], 1
        %596 = vst [vmem:[%s595] ss:$9 sm:$0xff] %v467
        %s597 = scalar_lea.vmem [#allocation1], 2
        %598 = vst [vmem:[%s597] ss:$9 sm:$0xff] %v468
        %s599 = scalar_lea.vmem [#allocation1], 3
        %600 = vst [vmem:[%s599] ss:$9 sm:$0xff] %v469
        %s601 = scalar_lea.vmem [#allocation1], 4
        %602 = vst [vmem:[%s601] ss:$9 sm:$0xff] %v470
        %s603 = scalar_lea.vmem [#allocation1], 5
        %604 = vst [vmem:[%s603] ss:$9 sm:$0xff] %v471
        %s605 = scalar_lea.vmem [#allocation1], 6
        %606 = vst [vmem:[%s605] ss:$9 sm:$0xff] %v472
        %s607 = scalar_lea.vmem [#allocation1], 7
        %608 = vst [vmem:[%s607] ss:$9 sm:$0xff] %v473
        %v609 = vld [vmem:[#allocation1] sm:$0xff]
        %610 = vst [vmem:[#allocation1] ss:$9 sm:$0xff] %v474
        %611 = vst [vmem:[%s595] ss:$9 sm:$0xff] %v475
        %612 = vst [vmem:[%s597] ss:$9 sm:$0xff] %v476
        %613 = vst [vmem:[%s599] ss:$9 sm:$0xff] %v477
        %614 = vst [vmem:[%s601] ss:$9 sm:$0xff] %v478
        %615 = vst [vmem:[%s603] ss:$9 sm:$0xff] %v479
        %616 = vst [vmem:[%s605] ss:$9 sm:$0xff] %v480
        %617 = vst [vmem:[%s607] ss:$9 sm:$0xff] %v481
        %v618 = vld [vmem:[#allocation1] sm:$0xff]
        %619 = vst [vmem:[#allocation1] ss:$9 sm:$0xff] %v482
        %620 = vst [vmem:[%s595] ss:$9 sm:$0xff] %v483
        %621 = vst [vmem:[%s597] ss:$9 sm:$0xff] %v484
        %622 = vst [vmem:[%s599] ss:$9 sm:$0xff] %v485
        %623 = vst [vmem:[%s601] ss:$9 sm:$0xff] %v486
        %624 = vst [vmem:[%s603] ss:$9 sm:$0xff] %v487
        %625 = vst [vmem:[%s605] ss:$9 sm:$0xff] %v488
        %626 = vst [vmem:[%s607] ss:$9 sm:$0xff] %v489
        %v627 = vld [vmem:[#allocation1] sm:$0xff]
        %628 = vst [vmem:[#allocation1] ss:$9 sm:$0xff] %v490
        %629 = vst [vmem:[%s595] ss:$9 sm:$0xff] %v491
        %630 = vst [vmem:[%s597] ss:$9 sm:$0xff] %v492
        %631 = vst [vmem:[%s599] ss:$9 sm:$0xff] %v493
        %632 = vst [vmem:[%s601] ss:$9 sm:$0xff] %v494
        %633 = vst [vmem:[%s603] ss:$9 sm:$0xff] %v495
        %634 = vst [vmem:[%s605] ss:$9 sm:$0xff] %v496
        %635 = vst [vmem:[%s607] ss:$9 sm:$0xff] %v497
        %v636 = vld [vmem:[#allocation1] sm:$0xff]
        %637 = vst [vmem:[#allocation1] ss:$9 sm:$0xff] %v498
        %638 = vst [vmem:[%s595] ss:$9 sm:$0xff] %v499
        %639 = vst [vmem:[%s597] ss:$9 sm:$0xff] %v500
        %640 = vst [vmem:[%s599] ss:$9 sm:$0xff] %v501
        %641 = vst [vmem:[%s601] ss:$9 sm:$0xff] %v502
        %642 = vst [vmem:[%s603] ss:$9 sm:$0xff] %v503
        %643 = vst [vmem:[%s605] ss:$9 sm:$0xff] %v504
        %644 = vst [vmem:[%s607] ss:$9 sm:$0xff] %v505
        %v645 = vld [vmem:[#allocation1] sm:$0xff]
        %646 = vst [vmem:[#allocation1] ss:$9 sm:$0xff] %v506
        %647 = vst [vmem:[%s595] ss:$9 sm:$0xff] %v507
        %648 = vst [vmem:[%s597] ss:$9 sm:$0xff] %v508
        %649 = vst [vmem:[%s599] ss:$9 sm:$0xff] %v509
        %650 = vst [vmem:[%s601] ss:$9 sm:$0xff] %v510
        %651 = vst [vmem:[%s603] ss:$9 sm:$0xff] %v511
        %652 = vst [vmem:[%s605] ss:$9 sm:$0xff] %v512
        %653 = vst [vmem:[%s607] ss:$9 sm:$0xff] %v513
        %v654 = vld [vmem:[#allocation1] sm:$0xff]
        %655 = vst [vmem:[#allocation1] ss:$9 sm:$0xff] %v514
        %656 = vst [vmem:[%s595] ss:$9 sm:$0xff] %v515
        %657 = vst [vmem:[%s597] ss:$9 sm:$0xff] %v516
        %658 = vst [vmem:[%s599] ss:$9 sm:$0xff] %v517
        %659 = vst [vmem:[%s601] ss:$9 sm:$0xff] %v518
        %660 = vst [vmem:[%s603] ss:$9 sm:$0xff] %v519
        %661 = vst [vmem:[%s605] ss:$9 sm:$0xff] %v520
        %662 = vst [vmem:[%s607] ss:$9 sm:$0xff] %v521
        %v663 = vld [vmem:[#allocation1] sm:$0xff]
        %664 = vst [vmem:[#allocation1] ss:$9 sm:$0xff] %v522
        %665 = vst [vmem:[%s595] ss:$9 sm:$0xff] %v523
        %666 = vst [vmem:[%s597] ss:$9 sm:$0xff] %v524
        %667 = vst [vmem:[%s599] ss:$9 sm:$0xff] %v525
        %668 = vst [vmem:[%s601] ss:$9 sm:$0xff] %v526
        %669 = vst [vmem:[%s603] ss:$9 sm:$0xff] %v527
        %670 = vst [vmem:[%s605] ss:$9 sm:$0xff] %v528
        %671 = vst [vmem:[%s607] ss:$9 sm:$0xff] %v529
        %v672 = vld [vmem:[#allocation1] sm:$0xff]
        %673 = vst [vmem:[#allocation1] ss:$9 sm:$0xff] %v530
        %674 = vst [vmem:[%s595] ss:$9 sm:$0xff] %v531
        %675 = vst [vmem:[%s597] ss:$9 sm:$0xff] %v532
        %676 = vst [vmem:[%s599] ss:$9 sm:$0xff] %v533
        %677 = vst [vmem:[%s601] ss:$9 sm:$0xff] %v534
        %678 = vst [vmem:[%s603] ss:$9 sm:$0xff] %v535
        %679 = vst [vmem:[%s605] ss:$9 sm:$0xff] %v536
        %680 = vst [vmem:[%s607] ss:$9 sm:$0xff] %v537
        %v681 = vld [vmem:[#allocation1] sm:$0xff]
        %682 = vst [vmem:[#allocation1] ss:$9 sm:$0xff] %v538
        %683 = vst [vmem:[%s595] ss:$9 sm:$0xff] %v539
        %684 = vst [vmem:[%s597] ss:$9 sm:$0xff] %v540
        %685 = vst [vmem:[%s599] ss:$9 sm:$0xff] %v541
        %686 = vst [vmem:[%s601] ss:$9 sm:$0xff] %v542
        %687 = vst [vmem:[%s603] ss:$9 sm:$0xff] %v543
        %688 = vst [vmem:[%s605] ss:$9 sm:$0xff] %v544
        %689 = vst [vmem:[%s607] ss:$9 sm:$0xff] %v545
        %v690 = vld [vmem:[#allocation1] sm:$0xff]
        %691 = vst [vmem:[#allocation1] ss:$9 sm:$0xff] %v546
        %692 = vst [vmem:[%s595] ss:$9 sm:$0xff] %v547
        %693 = vst [vmem:[%s597] ss:$9 sm:$0xff] %v548
        %694 = vst [vmem:[%s599] ss:$9 sm:$0xff] %v549
        %695 = vst [vmem:[%s601] ss:$9 sm:$0xff] %v550
        %696 = vst [vmem:[%s603] ss:$9 sm:$0xff] %v551
        %697 = vst [vmem:[%s605] ss:$9 sm:$0xff] %v552
        %698 = vst [vmem:[%s607] ss:$9 sm:$0xff] %v553
        %v699 = vld [vmem:[#allocation1] sm:$0xff]
        %700 = vst [vmem:[#allocation1] ss:$9 sm:$0xff] %v554
        %701 = vst [vmem:[%s595] ss:$9 sm:$0xff] %v555
        %702 = vst [vmem:[%s597] ss:$9 sm:$0xff] %v556
        %703 = vst [vmem:[%s599] ss:$9 sm:$0xff] %v557
        %704 = vst [vmem:[%s601] ss:$9 sm:$0xff] %v558
        %705 = vst [vmem:[%s603] ss:$9 sm:$0xff] %v559
        %706 = vst [vmem:[%s605] ss:$9 sm:$0xff] %v560
        %707 = vst [vmem:[%s607] ss:$9 sm:$0xff] %v561
        %v708 = vld [vmem:[#allocation1] sm:$0xff]
        %709 = vst [vmem:[#allocation1] ss:$9 sm:$0xff] %v562
        %710 = vst [vmem:[%s595] ss:$9 sm:$0xff] %v563
        %711 = vst [vmem:[%s597] ss:$9 sm:$0xff] %v564
        %712 = vst [vmem:[%s599] ss:$9 sm:$0xff] %v565
        %713 = vst [vmem:[%s601] ss:$9 sm:$0xff] %v566
        %714 = vst [vmem:[%s603] ss:$9 sm:$0xff] %v567
        %715 = vst [vmem:[%s605] ss:$9 sm:$0xff] %v568
        %716 = vst [vmem:[%s607] ss:$9 sm:$0xff] %v569
        %v717 = vld [vmem:[#allocation1] sm:$0xff]
        %718 = vst [vmem:[#allocation1] ss:$9 sm:$0xff] %v570
        %719 = vst [vmem:[%s595] ss:$9 sm:$0xff] %v571
        %720 = vst [vmem:[%s597] ss:$9 sm:$0xff] %v572
        %721 = vst [vmem:[%s599] ss:$9 sm:$0xff] %v573
        %722 = vst [vmem:[%s601] ss:$9 sm:$0xff] %v574
        %723 = vst [vmem:[%s603] ss:$9 sm:$0xff] %v575
        %724 = vst [vmem:[%s605] ss:$9 sm:$0xff] %v576
        %725 = vst [vmem:[%s607] ss:$9 sm:$0xff] %v577
        %v726 = vld [vmem:[#allocation1] sm:$0xff]
        %727 = vst [vmem:[#allocation1] ss:$9 sm:$0xff] %v578
        %728 = vst [vmem:[%s595] ss:$9 sm:$0xff] %v579
        %729 = vst [vmem:[%s597] ss:$9 sm:$0xff] %v580
        %730 = vst [vmem:[%s599] ss:$9 sm:$0xff] %v581
        %731 = vst [vmem:[%s601] ss:$9 sm:$0xff] %v582
        %732 = vst [vmem:[%s603] ss:$9 sm:$0xff] %v583
        %733 = vst [vmem:[%s605] ss:$9 sm:$0xff] %v584
        %734 = vst [vmem:[%s607] ss:$9 sm:$0xff] %v585
        %v735 = vld [vmem:[#allocation1] sm:$0xff]
        %736 = vst [vmem:[#allocation1] ss:$9 sm:$0xff] %v586
        %737 = vst [vmem:[%s595] ss:$9 sm:$0xff] %v587
        %738 = vst [vmem:[%s597] ss:$9 sm:$0xff] %v588
        %739 = vst [vmem:[%s599] ss:$9 sm:$0xff] %v589
        %740 = vst [vmem:[%s601] ss:$9 sm:$0xff] %v590
        %741 = vst [vmem:[%s603] ss:$9 sm:$0xff] %v591
        %742 = vst [vmem:[%s605] ss:$9 sm:$0xff] %v592
        %743 = vst [vmem:[%s607] ss:$9 sm:$0xff] %v593
        %v744 = vld [vmem:[#allocation1] sm:$0xff]
        %745 = vset.pattern.permute.xlu0 0
        %746 = vperm.xlu0 %745, %v609
        %v747 = vpop.permute.xlu0 %746
        %748 = vset.pattern.permute.xlu0 0
        %749 = vperm.xlu0 %748, %v618
        %v750 = vpop.permute.xlu0 %749
        %751 = vset.pattern.permute.xlu0 0
        %752 = vperm.xlu0 %751, %v627
        %v753 = vpop.permute.xlu0 %752
        %754 = vset.pattern.permute.xlu0 0
        %755 = vperm.xlu0 %754, %v636
        %v756 = vpop.permute.xlu0 %755
        %757 = vset.pattern.permute.xlu0 0
        %758 = vperm.xlu0 %757, %v645
        %v759 = vpop.permute.xlu0 %758
        %760 = vset.pattern.permute.xlu0 0
        %761 = vperm.xlu0 %760, %v654
        %v762 = vpop.permute.xlu0 %761
        %763 = vset.pattern.permute.xlu0 0
        %764 = vperm.xlu0 %763, %v663
        %v765 = vpop.permute.xlu0 %764
        %766 = vset.pattern.permute.xlu0 0
        %767 = vperm.xlu0 %766, %v672
        %v768 = vpop.permute.xlu0 %767
        %769 = vset.pattern.permute.xlu0 0
        %770 = vperm.xlu0 %769, %v681
        %v771 = vpop.permute.xlu0 %770
        %772 = vset.pattern.permute.xlu0 0
        %773 = vperm.xlu0 %772, %v690
        %v774 = vpop.permute.xlu0 %773
        %775 = vset.pattern.permute.xlu0 0
        %776 = vperm.xlu0 %775, %v699
        %v777 = vpop.permute.xlu0 %776
        %778 = vset.pattern.permute.xlu0 0
        %779 = vperm.xlu0 %778, %v708
        %v780 = vpop.permute.xlu0 %779
        %781 = vset.pattern.permute.xlu0 0
        %782 = vperm.xlu0 %781, %v717
        %v783 = vpop.permute.xlu0 %782
        %784 = vset.pattern.permute.xlu0 0
        %785 = vperm.xlu0 %784, %v726
        %v786 = vpop.permute.xlu0 %785
        %787 = vset.pattern.permute.xlu0 0
        %788 = vperm.xlu0 %787, %v735
        %v789 = vpop.permute.xlu0 %788
        %790 = vset.pattern.permute.xlu0 0
        %791 = vperm.xlu0 %790, %v744
        %v792 = vpop.permute.xlu0 %791
        %v793 = vlaneseq
        %v794 = vand.u32 %v793, 127
        %v795 = vperm.slane %v747, %v794
        %v796 = vadd.s32 %v794, 4294967288
        %v797 = vperm.slane %v750, %v796
        %vm798 = vcmask 130112
        %v799 = vsel %vm798, %v797, %v795
        %v800 = vadd.s32 %v794, 4294967280
        %v801 = vperm.slane %v753, %v800
        %vm802 = vcmask 195712
        %v803 = vsel %vm802, %v801, %v799
        %v804 = vadd.s32 %v794, 4294967272
        %v805 = vperm.slane %v756, %v804
        %vm806 = vcmask 261312
        %v807 = vsel %vm806, %v805, %v803
        %v808 = vadd.s32 %v794, 4294967264
        %v809 = vperm.slane %v759, %v808
        %vm810 = vcmask 326912
        %v811 = vsel %vm810, %v809, %v807
        %v812 = vadd.s32 %v794, 4294967256
        %v813 = vperm.slane %v762, %v812
        %vm814 = vcmask 392512
        %v815 = vsel %vm814, %v813, %v811
        %v816 = vadd.s32 %v794, 4294967248
        %v817 = vperm.slane %v765, %v816
        %vm818 = vcmask 458112
        %v819 = vsel %vm818, %v817, %v815
        %v820 = vadd.s32 %v794, 4294967240
        %v821 = vperm.slane %v768, %v820
        %vm822 = vcmask 523712
        %v823 = vsel %vm822, %v821, %v819
        %v824 = vadd.s32 %v794, 4294967232
        %v825 = vperm.slane %v771, %v824
        %vm826 = vcmask 589312
        %v827 = vsel %vm826, %v825, %v823
        %v828 = vadd.s32 %v794, 4294967224
        %v829 = vperm.slane %v774, %v828
        %vm830 = vcmask 654912
        %v831 = vsel %vm830, %v829, %v827
        %v832 = vadd.s32 %v794, 4294967216
        %v833 = vperm.slane %v777, %v832
        %vm834 = vcmask 720512
        %v835 = vsel %vm834, %v833, %v831
        %v836 = vadd.s32 %v794, 4294967208
        %v837 = vperm.slane %v780, %v836
        %vm838 = vcmask 786112
        %v839 = vsel %vm838, %v837, %v835
        %v840 = vadd.s32 %v794, 4294967200
        %v841 = vperm.slane %v783, %v840
        %vm842 = vcmask 851712
        %v843 = vsel %vm842, %v841, %v839
        %v844 = vadd.s32 %v794, 4294967192
        %v845 = vperm.slane %v786, %v844
        %vm846 = vcmask 917312
        %v847 = vsel %vm846, %v845, %v843
        %v848 = vadd.s32 %v794, 4294967184
        %v849 = vperm.slane %v789, %v848
        %vm850 = vcmask 982912
        %v851 = vsel %vm850, %v849, %v847
        %v852 = vadd.s32 %v794, 4294967176
        %v853 = vperm.slane %v792, %v852
        %vm854 = vcmask 1048512
        %v855 = vsel %vm854, %v853, %v851
        %v857 = vmin.f32 %v417, %v855
        %858 = vst [vmem:[%s253] sm:$0x1] %v857
        %p859 = scmp.eq.s32.totalorder %s33, 0
        %p860 = pnand %p859, %p412
        %p861 = pneg %p860
        // Predicated region
        $region41: #{tpu_custom_call.1} parent=27 // pred_check
          _
        $region42: #{tpu_custom_call.1} parent=27 // pred_check_branch
          %863 = sbr.rel (%p860) target = $region44
        $region43: #{tpu_custom_call.1} parent=27 // pred_region
          %864 = vst [vmem:[%s259] sm:$0x1] 1e+30
        $region44: #{tpu_custom_call.1} parent=27 // pred_fallthru
          _
        %s865 = scalar_lea.vmem %s259, %s262 [#allocation8]
        %v866 = vld [vmem:[%s865] sm:$0x1]
        %v867 = vmin.f32 %v365, %v377
        %v868 = vmin.f32 %v368, %v380
        %v869 = vmin.f32 %v371, %v383
        %v870 = vmin.f32 %v374, %v386
        %v871 = vmin.f32 %v867, %v389
        %v872 = vmin.f32 %v868, %v392
        %v873 = vmin.f32 %v869, %v395
        %v874 = vmin.f32 %v870, %v398
        %v875 = vmin.f32 %v871, %v401
        %v876 = vmin.f32 %v872, %v404
        %v877 = vmin.f32 %v873, %v407
        %v878 = vmin.f32 %v874, %v410
        %v879 = vmin.f32 %v875, %v876
        %v880 = vmin.f32 %v877, %v878
        %v881 = vmin.f32 %v879, %v880
        %v882 = vrot.slane %v881, 4
        %v883 = vmin.f32 %v881, %v882
        %v884 = vrot.slane %v883, 2
        %v885 = vmin.f32 %v883, %v884
        %v886 = vrot.slane %v885, 1
        %v887 = vmin.f32 %v885, %v886
        %v888 = vmin.f32 %v866, %v887
        %889 = vst [vmem:[%s865] sm:$0x1] %v888
        %s890 = sand.u32 %s110, 1
        %s891 = scalar_lea.sflag [#allocation4], %s890
        %s892 = sand.u32 %s110, 1
        %s893 = scalar_lea.vmem [#allocation7], %s892
        %s894 = sand.u32 %s136, 1
        %s895 = scalar_lea.sflag [#allocation9], %s894
        %s896 = sand.u32 %s136, 1
        %s897 = scalar_lea.vmem [#allocation8], %s896
        // Predicated region
        $region45: #{tpu_custom_call.1} parent=27 // pred_check
          %p898 = pneg %p120
        $region46: #{tpu_custom_call.1} parent=27 // pred_check_branch
          %900 = sbr.rel (%p898) target = $region48
        $region47: #{tpu_custom_call.1} parent=27 // pred_region
          %902 = vsyncadd %s891, 0
          %s903 = sadd.s32 %s33, %s32
          %s904 = scalar_lea.hbm %s2, %s903
          %s906 = sshll.u32 %s893, 4
          %s907 = int_to_ptr.vmem [resolvable:$true] %s906
          %s908 = sshll.u32 %s904, 4
          %s909 = int_to_ptr.hbm [resolvable:$true] %s908
          %911 = dma.vmem_to_hbm [thread:$0]  %s907, 16, %s909, %s891
        $region48: #{tpu_custom_call.1} parent=27 // pred_fallthru
          _
        // Predicated region
        $region49: #{tpu_custom_call.1} parent=27 // pred_check
          %p912 = pneg %p146
        $region50: #{tpu_custom_call.1} parent=27 // pred_check_branch
          %914 = sbr.rel (%p912) target = $region52
        $region51: #{tpu_custom_call.1} parent=27 // pred_region
          %916 = vsyncadd %s895, 0
          %s917 = scalar_lea.hbm %s3, %s32
          %s919 = sshll.u32 %s897, 4
          %s920 = int_to_ptr.vmem [resolvable:$true] %s919
          %s921 = sshll.u32 %s917, 4
          %s922 = int_to_ptr.hbm [resolvable:$true] %s921
          %924 = dma.vmem_to_hbm [thread:$0]  %s920, 16, %s922, %s895
        $region52: #{tpu_custom_call.1} parent=27 // pred_fallthru
          _
      $region28: #{tpu_custom_call.1} parent=5 // pred_fallthru
        _
      %p925 = scmp.le.s32.totalorder 2, %s22
      // Predicated region
      $region53: #{tpu_custom_call.1} parent=5 // pred_check
        %p926 = pneg %p925
      $region54: #{tpu_custom_call.1} parent=5 // pred_check_branch
        %928 = sbr.rel (%p926) target = $region56
      $region55: #{tpu_custom_call.1} parent=5 // pred_region
        %s929 = ssub.s32 %s22, 2
        // Predicated region
        $region57: #{tpu_custom_call.1} parent=55 // pred_check
          %p930 = pneg %p126
        $region58: #{tpu_custom_call.1} parent=55 // pred_check_branch
          %932 = sbr.rel (%p930) target = $region60
        $region59: #{tpu_custom_call.1} parent=55 // pred_region
          %s933 = sand.u32 %s111, 1
          %s934 = scalar_lea.sflag [#allocation4], %s933
          %s935 = sand.u32 %s111, 1
          %s936 = scalar_lea.vmem [#allocation7], %s935
          %938 = dma.done %s934, 16
        $region60: #{tpu_custom_call.1} parent=55 // pred_fallthru
          _
        // Predicated region
        $region61: #{tpu_custom_call.1} parent=55 // pred_check
          %p939 = pneg %p152
        $region62: #{tpu_custom_call.1} parent=55 // pred_check_branch
          %941 = sbr.rel (%p939) target = $region64
        $region63: #{tpu_custom_call.1} parent=55 // pred_region
          %s942 = sand.u32 %s137, 1
          %s943 = scalar_lea.sflag [#allocation9], %s942
          %s944 = sand.u32 %s137, 1
          %s945 = scalar_lea.vmem [#allocation8], %s944
          %947 = dma.done %s943, 16
        $region64: #{tpu_custom_call.1} parent=55 // pred_fallthru
          _
      $region56: #{tpu_custom_call.1} parent=5 // pred_fallthru
        _
    $region6: #{tpu_custom_call.1} parent=1 // loop_footer
      %s26 = sadd.s32 1, %s22
    $region7: #{tpu_custom_call.1} parent=1 // loop_footer_branch
      %21 = sbr.rel target = $region3
    $region8: #{tpu_custom_call.1} parent=1 // loop_exit
      _
    %948 = vsyncpa [#allocation3], 1
    %s949 = scalar_lea.sflag [#allocation3], 1
    %950 = vsyncpa %s949, 1
    %951 = vsyncpa [#allocation6], 1
    %s952 = scalar_lea.sflag [#allocation6], 1
    %953 = vsyncpa %s952, 1
    %954 = vsyncpa [#allocation4], 1
    %s955 = scalar_lea.sflag [#allocation4], 1
    %956 = vsyncpa %s955, 1
    %957 = vsyncpa [#allocation9], 1
    %s958 = scalar_lea.sflag [#allocation9], 1
    %959 = vsyncpa %s958, 1

</llo_original>
